<compile_context>
chip_gen: v6e
topology: v6e:2x2x1
jax: 0.10.0
libtpu: 0.0.40
codegen_flags: <defaults>
</compile_context>

<pallas_src>
from functools import partial

import jax
import jax.numpy as jnp
from jax.experimental import pallas as pl
from jax.experimental.pallas import tpu as pltpu


_LANE = 128      # vreg lane width — hidden/output dims padded to this (dense stores)
_SUBLANE = 8     # vreg sublane count — batch-tile granularity


def _round_up(x, m):
    return ((x + m - 1) // m) * m


def _pad2d(a, rows, cols):
    pr, pc = rows - a.shape[0], cols - a.shape[1]
    if pr == 0 and pc == 0:
        return a
    return jnp.pad(a, ((0, pr), (0, pc)))


def _vmem_capacity_bytes():
    """Physical VMEM per TensorCore (v5e/v6e: 128 MiB, v7x: 64 MiB)."""
    try:
        return int(pltpu.get_tpu_info().vmem_capacity_bytes)
    except Exception:
        try:
            kind = jax.devices()[0].device_kind.lower()
        except Exception:
            kind = ""
        return (64 if "v7" in kind else 128) * 1024 * 1024


def _is_v5e():
    """v5e has no bf16 VPU/EUP — keep tanh in f32 there."""
    try:
        kind = jax.devices()[0].device_kind.lower()
    except Exception:
        return False
    return ("v5 lite" in kind) or ("v5e" in kind) or ("v5lite" in kind)


def _vmem_limit(footprint_bytes, capacity_bytes):
    """Explicit scoped-VMEM limit: actual footprint + headroom, capped below physical."""
    limit = max(int(footprint_bytes) + (8 << 20), 32 << 20)
    limit = min(limit, capacity_bytes - (4 << 20))
    return int(max(limit, int(footprint_bytes) + (2 << 20)))


def _probe_single_buffer_support():
    if not hasattr(pl, "Buffered"):
        return False
    try:
        pl.BlockSpec((_SUBLANE, _LANE), lambda i: (0, 0), pipeline_mode=pl.Buffered(1))
        return True
    except Exception:
        return False


# Single-buffering of VMEM-resident operands (constant index map => fetched once).
_SINGLE_BUFFER_WEIGHTS = _probe_single_buffer_support()


def _resident_spec(shape, single_buffer):
    """BlockSpec for a VMEM-resident operand (constant block index)."""
    index_map = lambda i: (0, 0)
    if single_buffer:
        return pl.BlockSpec(shape, index_map, pipeline_mode=pl.Buffered(1))
    return pl.BlockSpec(shape, index_map)


# ----------------------------------------------------------------------------
# Kernel math:  tanh(x @ W1 + b1) @ W2   (+ b2 added by the caller kernel)
# Weights arrive already padded and pre-cast (f32 or bf16) from the wrapper;
# x is cast to the weight dtype per tile (cheap: TM x D elements, D small).
# ----------------------------------------------------------------------------
def _two_layer(x, w1, b1, w2, bf16_tanh):
    x = x.astype(w1.dtype)
    pre = jnp.dot(x, w1, preferred_element_type=jnp.float32) + b1   # f32 accumulate
    if bf16_tanh:
        pre = pre.astype(jnp.bfloat16)          # bf16 EUP tanh (v6e/v7x fast path)
    h = jnp.tanh(pre).astype(w2.dtype)
    return jnp.dot(h, w2, preferred_element_type=jnp.float32)       # f32 accumulate


def _mlp_resident_kernel(x_ref, w1_ref, b1_ref, w2_ref, b2_ref, o_ref, *, bf16_tanh):
    y = _two_layer(x_ref[...], w1_ref[...], b1_ref[...], w2_ref[...], bf16_tanh)
    o_ref[...] = (y + b2_ref[...]).astype(o_ref.dtype)


def _mlp_hidden_tiled_kernel(x_ref, w1_ref, b1_ref, w2_ref, b2_ref, o_ref, acc_ref,
                             *, bf16_tanh):
    """Fallback for weights too large for VMEM residency: tile the hidden dim."""
    h_idx = pl.program_id(1)

    @pl.when(h_idx == 0)
    def _init():
        acc_ref[...] = jnp.zeros_like(acc_ref)

    acc_ref[...] += _two_layer(x_ref[...], w1_ref[...], b1_ref[...], w2_ref[...],
                               bf16_tanh)

    @pl.when(h_idx == pl.num_programs(1) - 1)
    def _finalize():
        o_ref[...] = (acc_ref[...] + b2_ref[...]).astype(o_ref.dtype)


# ----------------------------------------------------------------------------
# Wrapper: run the underlying MLP with the given (sampled or mean) parameters.
# ----------------------------------------------------------------------------
def bnet_mlp_forward(x, w1, b1, w2, b2, *, use_bf16_matmul=False, bf16_tanh=None,
                     block_rows=2048, vmem_budget_bytes=None):
    """y = tanh(x @ W1 + b1) @ W2 + b2 via a fused Pallas TPU kernel.

    Args:
        x:  (N, D) input.
        w1: (D, H) first-layer weight  ([in_features, out_features] layout).
        b1: (H,) or (1, H) first-layer bias.
        w2: (H, O) second-layer weight ([in_features, out_features] layout).
        b2: (O,) or (1, O) second-layer bias.
    Returns:
        (N, O) float32 output.
    """
    global _SINGLE_BUFFER_WEIGHTS

    x = jnp.asarray(x, jnp.float32)
    w1 = jnp.asarray(w1, jnp.float32)
    w2 = jnp.asarray(w2, jnp.float32)
    b1 = jnp.asarray(b1, jnp.float32).reshape(1, -1)
    b2 = jnp.asarray(b2, jnp.float32).reshape(1, -1)

    N, D = x.shape
    Dw, H = w1.shape
    Hw, O = w2.shape
    assert D == Dw and H == Hw and b1.shape[1] == H and b2.shape[1] == O

    if bf16_tanh is None:
        bf16_tanh = bool(use_bf16_matmul) and not _is_v5e()
    bf16_tanh = bool(bf16_tanh and use_bf16_matmul)

    # Lane-dense padding of hidden/output dims ONLY (exact: zero W1 cols/b1 entries
    # give tanh(0)=0 hidden units times zero W2 rows; padded output cols sliced off).
    # x's feature dim D and the batch dim N are intentionally NOT padded.
    Hp = _round_up(H, _LANE)
    Op = _round_up(O, _LANE)

    capacity = _vmem_capacity_bytes()
    budget = (int(vmem_budget_bytes) if vmem_budget_bytes is not None
              else (capacity * 7) // 10)          # ~45 MiB v7x, ~90 MiB v5e/v6e

    w_dtype = jnp.bfloat16 if use_bf16_matmul else jnp.float32
    w_elem = 2 if use_bf16_matmul else 4
    wbuf = 1 if _SINGLE_BUFFER_WEIGHTS else 2
    headroom = 1 << 20
    row_bytes = 2 * 4 * (D + Op)                  # double-buffered x + y tiles per row
    resident_bytes = wbuf * (w_elem * (D * Hp + Hp * Op) + 4 * (Hp + Op))
    b2p = _pad2d(b2, 1, Op)

    if resident_bytes + _SUBLANE * row_bytes + headroom <= budget:
        # ---- Fast path: W1/b1/W2/b2 VMEM-resident across a batch-parallel grid ----
        w1p = _pad2d(w1, D, Hp).astype(w_dtype)   # pad + pre-cast ONCE in the wrapper
        w2p = _pad2d(w2, Hp, Op).astype(w_dtype)
        b1p = _pad2d(b1, 1, Hp)

        tm_cap = max(_SUBLANE,
                     ((budget - resident_bytes - headroom) // row_bytes)
                     // _SUBLANE * _SUBLANE)
        max_rows = tm_cap if block_rows is None else min(
            _round_up(block_rows, _SUBLANE), tm_cap)
        TM = min(max_rows, _round_up(N, _SUBLANE))
        if N > _SUBLANE:
            # Keep >= 2 grid steps so v7x's two TensorCores both get work
            # (costs only ~0.35us of step overhead on single-TC v5e/v6e).
            TM = min(TM, _round_up(pl.cdiv(N, 2), _SUBLANE))
        TM = max(_SUBLANE, TM)
        grid = (pl.cdiv(N, TM),)

        # Footprint for the scoped-VMEM limit (conservatively assume double buffers).
        footprint = (2 * (w_elem * (D * Hp + Hp * Op) + 4 * (Hp + Op))
                     + 2 * TM * (D + Op) * 4)
        cost = pl.CostEstimate(
            flops=2 * N * (D * Hp + Hp * Op),
            transcendentals=N * Hp,
            bytes_accessed=4 * (N * D + N * Op + Hp + Op)
            + w_elem * (D * Hp + Hp * Op),
        )

        def call(single_buffer):
            return pl.pallas_call(
                partial(_mlp_resident_kernel, bf16_tanh=bf16_tanh),
                out_shape=jax.ShapeDtypeStruct((N, Op), jnp.float32),
                grid=grid,
                in_specs=[
                    pl.BlockSpec((TM, D), lambda i: (i, 0)),    # x: unpadded, batch-tiled
                    _resident_spec((D, Hp), single_buffer),     # W1: VMEM-resident
                    _resident_spec((1, Hp), single_buffer),     # b1: VMEM-resident
                    _resident_spec((Hp, Op), single_buffer),    # W2: VMEM-resident
                    _resident_spec((1, Op), single_buffer),     # b2: VMEM-resident
                ],
                out_specs=pl.BlockSpec((TM, Op), lambda i: (i, 0)),   # lane-dense stores
                compiler_params=pltpu.CompilerParams(
                    dimension_semantics=("parallel",),          # megacore split on v7x
                    vmem_limit_bytes=_vmem_limit(footprint, capacity)),
                cost_estimate=cost,
            )(x, w1p, b1p, w2p, b2p)

        try:
            out = call(_SINGLE_BUFFER_WEIGHTS)
        except Exception:
            if not _SINGLE_BUFFER_WEIGHTS:
                raise
            _SINGLE_BUFFER_WEIGHTS = False      # pipeline_mode unsupported: retry 2-buf
            out = call(False)
    else:
        # ---- Fallback: hidden-dim tiling (grid=(batch, hidden), "arbitrary" axis,
        #      f32 VMEM accumulator, init/finalize via pl.when). v7x (64 MiB) hits
        #      this first; hidden padding to a TH multiple is exact (zeros). ----
        TM = max(_SUBLANE, min(_round_up(N, _SUBLANE), 256))
        if N > _SUBLANE:
            TM = min(TM, _round_up(pl.cdiv(N, 2), _SUBLANE))
        TM = max(_SUBLANE, TM)
        fixed = 2 * TM * (D + Op) * 4 + TM * Op * 4 + 2 * 4 * Op + headroom
        th_unit = 2 * (w_elem * (D + Op) + 4)     # per hidden unit, double-buffered
        TH = max(_LANE, ((budget - fixed) // th_unit) // _LANE * _LANE)
        TH = min(TH, Hp)
        Hp2 = _round_up(Hp, TH)

        w1p = _pad2d(w1, D, Hp2).astype(w_dtype)
        w2p = _pad2d(w2, Hp2, Op).astype(w_dtype)
        b1p = _pad2d(b1, 1, Hp2)
        grid = (pl.cdiv(N, TM), Hp2 // TH)

        footprint = fixed + th_unit * TH
        cost = pl.CostEstimate(
            flops=2 * N * (D * Hp2 + Hp2 * Op),
            transcendentals=N * Hp2,
            bytes_accessed=4 * (N * D + N * Op + Hp2 + Op)
            + grid[0] * w_elem * (D * Hp2 + Hp2 * Op),
        )

        out = pl.pallas_call(
            partial(_mlp_hidden_tiled_kernel, bf16_tanh=bf16_tanh),
            out_shape=jax.ShapeDtypeStruct((N, Op), jnp.float32),
            grid=grid,
            in_specs=[
                pl.BlockSpec((TM, D), lambda i, h: (i, 0)),     # x: batch-tiled
                pl.BlockSpec((D, TH), lambda i, h: (0, h)),     # W1: hidden-tiled
                pl.BlockSpec((1, TH), lambda i, h: (0, h)),     # b1: hidden-tiled
                pl.BlockSpec((TH, Op), lambda i, h: (h, 0)),    # W2: hidden-tiled
                pl.BlockSpec((1, Op), lambda i, h: (0, 0)),     # b2
            ],
            out_specs=pl.BlockSpec((TM, Op), lambda i, h: (i, 0)),
            scratch_shapes=[pltpu.VMEM((TM, Op), jnp.float32)],
            compiler_params=pltpu.CompilerParams(
                dimension_semantics=("parallel", "arbitrary"),
                vmem_limit_bytes=_vmem_limit(footprint, capacity)),
            cost_estimate=cost,
        )(x, w1p, b1p, w2p, b2p)

    return out if Op == O else out[:, :O]


# ----------------------------------------------------------------------------
# Reparameterized sampling (Gaussian_1d): mu + softplus(rho) * eps
# ----------------------------------------------------------------------------
def _sample_params(mus, rhos, key):
    keys = jax.random.split(key, len(mus))
    return [mu + jax.nn.softplus(rho) * jax.random.normal(k, mu.shape, mu.dtype)
            for mu, rho, k in zip(mus, rhos, keys)]


@partial(jax.jit, static_argnames=("use_bf16_matmul", "block_rows"))
def _fused_sampled_forward(x, mus, rhos, key, *, use_bf16_matmul=False,
                           block_rows=2048):
    """Sampling + forward under one jit so XLA fuses the reparameterization and the
    bf16 casts into a single pass over the parameters (no extra HBM round trips)."""
    # TODO(synk): move the sampling fully inside the Pallas kernel
    # (pltpu.prng_seed + pltpu.stateful_normal over the resident weight blocks)
    # so sampled forwards cost the same HBM traffic as the eval path.
    w1, b1, w2, b2 = _sample_params(list(mus), list(rhos), key)
    return bnet_mlp_forward(x, w1, b1, w2, b2,
                            use_bf16_matmul=use_bf16_matmul, block_rows=block_rows)


# ----------------------------------------------------------------------------
# BNet: variational parameter container + forward (plain-JAX bookkeeping)
# ----------------------------------------------------------------------------
class BNetPallas:
    """Bayesian wrapper around a Linear(d,h)->Tanh->Linear(h,o) MLP.

    Holds one (mu, rho) pair per deterministic parameter of the underlying model;
    eval forward uses mu, sampling forward uses mu + softplus(rho)*eps
    (Gaussian_1d reparameterization), matching the PyTorch BNet.
    """

    def __init__(self, key, in_dim, hidden, out_dim,
                 pi=0.5, sigma1=1.0, sigma2=1.0,
                 mu_init_lower=-0.2, mu_init_upper=0.2,
                 rho_init_lower=-5.0, rho_init_upper=-4.0):
        # Parameters stored directly in the layout the kernel consumes:
        # weights [in_features, out_features], biases (features,) — no per-call
        # transposes on the latency-critical path.
        self.param_names = ["fc1.weight", "fc1.bias", "fc2.weight", "fc2.bias"]
        shapes = [(in_dim, hidden), (hidden,), (hidden, out_dim), (out_dim,)]
        self.mus, self.rhos = [], []
        for shp in shapes:
            key, k_mu, k_rho = jax.random.split(key, 3)
            self.mus.append(jax.random.uniform(
                k_mu, shp, jnp.float32, mu_init_lower, mu_init_upper))
            self.rhos.append(jax.random.uniform(
                k_rho, shp, jnp.float32, rho_init_lower, rho_init_upper))
        self.nparams = len(self.mus)
        self.log_prior = 0.0
        self.log_variational_posterior = 0.0
        # TODO(synk): GMM2_1d prior / Gaussian_1d posterior log-probs (training-only
        # ELBO scalar reductions) are not implemented in this inference kernel.

    def sample_params(self, key):
        """Reparameterized samples  mu + softplus(rho) * eps  (Gaussian_1d)."""
        return _sample_params(self.mus, self.rhos, key)

    def forward(self, x, sample=False, par_samples=None, key=None,
                use_bf16_matmul=False, block_rows=2048):
        self.log_prior, self.log_variational_posterior = 0, 0   # eval semantics
        if sample:
            assert par_samples is None and key is not None
            return _fused_sampled_forward(x, tuple(self.mus), tuple(self.rhos), key,
                                          use_bf16_matmul=use_bf16_matmul,
                                          block_rows=block_rows)
        if par_samples is None:
            par_samples = list(self.mus)
        assert len(par_samples) == self.nparams
        w1, b1, w2, b2 = par_samples
        return bnet_mlp_forward(x, w1, b1, w2, b2,
                                use_bf16_matmul=use_bf16_matmul,
                                block_rows=block_rows)


# ----------------------------------------------------------------------------
if __name__ == "__main__":
    key = jax.random.PRNGKey(0)
    k_param, k_x, k_x2, k_x3, k_sample, k_param2 = jax.random.split(key, 6)

    N, D, H, O = 8, 4, 32, 3
    net = BNetPallas(k_param, in_dim=D, hidden=H, out_dim=O)
    x = jax.random.normal(k_x, (N, D), jnp.float32)

    def mlp_ref(xi, params):
        w1, b1, w2, b2 = params
        return jnp.tanh(xi @ w1 + b1.reshape(1, -1)) @ w2 + b2.reshape(1, -1)

    # 1) Eval-mode forward (variational means), f32.
    y = jax.block_until_ready(net.forward(x, sample=False))
    y_ref = mlp_ref(x, net.mus)
    assert y.shape == (N, O)
    if not jnp.allclose(y, y_ref, atol=1e-4, rtol=1e-4):
        raise AssertionError("Pallas BNet eval forward mismatch vs reference")

    # 2) Multi-step batch grid with a partial boundary block (N=30, TM=8 -> 4 steps).
    x2 = jax.random.normal(k_x2, (30, D), jnp.float32)
    y2 = jax.block_until_ready(net.forward(x2, sample=False, block_rows=8))
    assert y2.shape == (30, O)
    if not jnp.allclose(y2, mlp_ref(x2, net.mus), atol=1e-4, rtol=1e-4):
        raise AssertionError("Pallas BNet tiled forward mismatch vs reference")

    # 3) Explicit reparameterized parameter samples, f32.
    par_samples = net.sample_params(k_sample)
    y_s = jax.block_until_ready(net.forward(x, par_samples=par_samples))
    if not jnp.allclose(y_s, mlp_ref(x, par_samples), atol=1e-4, rtol=1e-4):
        raise AssertionError("Pallas BNet sampled-params forward mismatch vs reference")

    # 4) sample=True path: sampling fused with the forward under one jit (same draws).
    y_s2 = jax.block_until_ready(net.forward(x, sample=True, key=k_sample))
    if not jnp.allclose(y_s2, mlp_ref(x, par_samples), atol=1e-4, rtol=1e-4):
        raise AssertionError("Pallas BNet fused sampled forward mismatch vs reference")

    # 5) bf16 MXU-operand fast path (f32 accumulation), looser tolerance.
    y_bf16 = jax.block_until_ready(net.forward(x, use_bf16_matmul=True))
    if not jnp.allclose(y_bf16, y_ref, atol=3e-2, rtol=3e-2):
        raise AssertionError("Pallas BNet bf16 forward mismatch vs reference")

    # 6) Hidden-dim-tiled fallback (weights forced out of VMEM residency via a tiny
    #    budget) — exercises the accumulator grid path with multiple hidden tiles.
    H2 = 512
    net2 = BNetPallas(k_param2, in_dim=D, hidden=H2, out_dim=O)
    x3 = jax.random.normal(k_x3, (16, D), jnp.float32)
    y3 = jax.block_until_ready(
        bnet_mlp_forward(x3, net2.mus[0], net2.mus[1], net2.mus[2], net2.mus[3],
                         vmem_budget_bytes=300 * 1024))
    if not jnp.allclose(y3, mlp_ref(x3, net2.mus), atol=1e-4, rtol=1e-4):
        raise AssertionError("Pallas BNet hidden-tiled fallback mismatch vs reference")

    print("KERNEL_OK")
</pallas_src>

<mosaic_0001>
module attributes {stable_mosaic.version = 11 : i64} {
  func.func @_mlp_resident_kernel(%arg0: i32, %arg1: memref<8x4xf32, #tpu.memory_space<vmem>>, %arg2: memref<4x128xf32, #tpu.memory_space<vmem>>, %arg3: memref<1x128xf32, #tpu.memory_space<vmem>>, %arg4: memref<128x128xf32, #tpu.memory_space<vmem>>, %arg5: memref<1x128xf32, #tpu.memory_space<vmem>>, %arg6: memref<8x128xf32, #tpu.memory_space<vmem>>) attributes {dimension_semantics = [#tpu.dimension_semantics<parallel>], iteration_bounds = array<i64: 1>, scalar_prefetch = 0 : i64, scratch_operands = 0 : i64, tpu.core_type = #tpu.core_type<tc>, window_params = [{transform_indices = @transform_0, window_bounds = array<i64: 8, 4>}, {pipeline_mode = #tpu.pipeline_mode<synchronous>, transform_indices = @transform_1, window_bounds = array<i64: 4, 128>}, {pipeline_mode = #tpu.pipeline_mode<synchronous>, transform_indices = @transform_2, window_bounds = array<i64: 1, 128>}, {pipeline_mode = #tpu.pipeline_mode<synchronous>, transform_indices = @transform_3, window_bounds = array<i64: 128, 128>}, {pipeline_mode = #tpu.pipeline_mode<synchronous>, transform_indices = @transform_4, window_bounds = array<i64: 1, 128>}, {transform_indices = @transform_5, window_bounds = array<i64: 8, 128>}]} {
    %c0 = arith.constant 0 : index
    %c0_0 = arith.constant 0 : index
    %0 = vector.load %arg1[%c0, %c0_0] : memref<8x4xf32, #tpu.memory_space<vmem>>, vector<8x4xf32>
    %c0_1 = arith.constant 0 : index
    %c0_2 = arith.constant 0 : index
    %1 = vector.load %arg2[%c0_1, %c0_2] : memref<4x128xf32, #tpu.memory_space<vmem>>, vector<4x128xf32>
    %c0_3 = arith.constant 0 : index
    %c0_4 = arith.constant 0 : index
    %2 = vector.load %arg3[%c0_3, %c0_4] : memref<1x128xf32, #tpu.memory_space<vmem>>, vector<1x128xf32>
    %c0_5 = arith.constant 0 : index
    %c0_6 = arith.constant 0 : index
    %3 = vector.load %arg4[%c0_5, %c0_6] : memref<128x128xf32, #tpu.memory_space<vmem>>, vector<128x128xf32>
    %cst = arith.constant dense<0.000000e+00> : vector<8x128xf32>
    %4 = tpu.matmul %0, %1, %cst {dimension_numbers = #tpu.dot_dimension_numbers<[1], [0], [0], [1], [0, 0, 1, 1], [], []>} : vector<8x4xf32>, vector<4x128xf32>, vector<8x128xf32> -> vector<8x128xf32>
    %5 = vector.broadcast %2 : vector<1x128xf32> to vector<8x128xf32>
    %6 = arith.addf %4, %5 : vector<8x128xf32>
    %7 = math.tanh %6 : vector<8x128xf32>
    %cst_7 = arith.constant dense<0.000000e+00> : vector<8x128xf32>
    %8 = tpu.matmul %7, %3, %cst_7 {dimension_numbers = #tpu.dot_dimension_numbers<[1], [0], [0], [1], [0, 0, 1, 1], [], []>} : vector<8x128xf32>, vector<128x128xf32>, vector<8x128xf32> -> vector<8x128xf32>
    %c0_8 = arith.constant 0 : index
    %c0_9 = arith.constant 0 : index
    %9 = vector.load %arg5[%c0_8, %c0_9] : memref<1x128xf32, #tpu.memory_space<vmem>>, vector<1x128xf32>
    %10 = vector.broadcast %9 : vector<1x128xf32> to vector<8x128xf32>
    %11 = arith.addf %8, %10 : vector<8x128xf32>
    %c0_10 = arith.constant 0 : index
    %c0_11 = arith.constant 0 : index
    %12 = vector.load %arg6[%c0_10, %c0_11] : memref<8x128xf32, #tpu.memory_space<vmem>>, vector<8x128xf32>
    tpu.vector_store %arg6[%c0_10, %c0_11], %11 {strides = array<i32>} : memref<8x128xf32, #tpu.memory_space<vmem>>, vector<8x128xf32>,
    return
  }
  func.func @transform_0(%arg0: i32) -> (i32, i32) {
    %c0_i32 = arith.constant 0 : i32
    %c0_i32_0 = arith.constant 0 : i32
    return %arg0, %c0_i32 : i32, i32
  }
  func.func @transform_1(%arg0: i32) -> (i32, i32) {
    %c0_i32 = arith.constant 0 : i32
    %c0_i32_0 = arith.constant 0 : i32
    %c0_i32_1 = arith.constant 0 : i32
    return %c0_i32, %c0_i32_0 : i32, i32
  }
  func.func @transform_2(%arg0: i32) -> (i32, i32) {
    %c0_i32 = arith.constant 0 : i32
    %c0_i32_0 = arith.constant 0 : i32
    %c0_i32_1 = arith.constant 0 : i32
    return %c0_i32, %c0_i32_0 : i32, i32
  }
  func.func @transform_3(%arg0: i32) -> (i32, i32) {
    %c0_i32 = arith.constant 0 : i32
    %c0_i32_0 = arith.constant 0 : i32
    %c0_i32_1 = arith.constant 0 : i32
    return %c0_i32, %c0_i32_0 : i32, i32
  }
  func.func @transform_4(%arg0: i32) -> (i32, i32) {
    %c0_i32 = arith.constant 0 : i32
    %c0_i32_0 = arith.constant 0 : i32
    %c0_i32_1 = arith.constant 0 : i32
    return %c0_i32, %c0_i32_0 : i32, i32
  }
  func.func @transform_5(%arg0: i32) -> (i32, i32) {
    %c0_i32 = arith.constant 0 : i32
    %c0_i32_0 = arith.constant 0 : i32
    return %arg0, %c0_i32 : i32, i32
  }
}

module attributes {stable_mosaic.version = 11 : i64} {
  func.func @_mlp_resident_kernel(%arg0: i32, %arg1: memref<8x4xf32, #tpu.memory_space<vmem>>, %arg2: memref<4x128xf32, #tpu.memory_space<vmem>>, %arg3: memref<1x128xf32, #tpu.memory_space<vmem>>, %arg4: memref<128x128xf32, #tpu.memory_space<vmem>>, %arg5: memref<1x128xf32, #tpu.memory_space<vmem>>, %arg6: memref<8x128xf32, #tpu.memory_space<vmem>>) attributes {dimension_semantics = [#tpu.dimension_semantics<parallel>], iteration_bounds = array<i64: 1>, scalar_prefetch = 0 : i64, scratch_operands = 0 : i64, tpu.core_type = #tpu.core_type<tc>, window_params = [{transform_indices = @transform_0, window_bounds = array<i64: 8, 4>}, {pipeline_mode = #tpu.pipeline_mode<synchronous>, transform_indices = @transform_1, window_bounds = array<i64: 4, 128>}, {pipeline_mode = #tpu.pipeline_mode<synchronous>, transform_indices = @transform_2, window_bounds = array<i64: 1, 128>}, {pipeline_mode = #tpu.pipeline_mode<synchronous>, transform_indices = @transform_3, window_bounds = array<i64: 128, 128>}, {pipeline_mode = #tpu.pipeline_mode<synchronous>, transform_indices = @transform_4, window_bounds = array<i64: 1, 128>}, {transform_indices = @transform_5, window_bounds = array<i64: 8, 128>}]} {
    %c0 = arith.constant 0 : index
    %c0_0 = arith.constant 0 : index
    %0 = vector.load %arg1[%c0, %c0_0] : memref<8x4xf32, #tpu.memory_space<vmem>>, vector<8x4xf32>
    %c0_1 = arith.constant 0 : index
    %c0_2 = arith.constant 0 : index
    %1 = vector.load %arg2[%c0_1, %c0_2] : memref<4x128xf32, #tpu.memory_space<vmem>>, vector<4x128xf32>
    %c0_3 = arith.constant 0 : index
    %c0_4 = arith.constant 0 : index
    %2 = vector.load %arg3[%c0_3, %c0_4] : memref<1x128xf32, #tpu.memory_space<vmem>>, vector<1x128xf32>
    %c0_5 = arith.constant 0 : index
    %c0_6 = arith.constant 0 : index
    %3 = vector.load %arg4[%c0_5, %c0_6] : memref<128x128xf32, #tpu.memory_space<vmem>>, vector<128x128xf32>
    %cst = arith.constant dense<0.000000e+00> : vector<8x128xf32>
    %4 = tpu.matmul %0, %1, %cst {dimension_numbers = #tpu.dot_dimension_numbers<[1], [0], [0], [1], [0, 0, 1, 1], [], []>} : vector<8x4xf32>, vector<4x128xf32>, vector<8x128xf32> -> vector<8x128xf32>
    %5 = vector.broadcast %2 : vector<1x128xf32> to vector<8x128xf32>
    %6 = arith.addf %4, %5 : vector<8x128xf32>
    %7 = math.tanh %6 : vector<8x128xf32>
    %cst_7 = arith.constant dense<0.000000e+00> : vector<8x128xf32>
    %8 = tpu.matmul %7, %3, %cst_7 {dimension_numbers = #tpu.dot_dimension_numbers<[1], [0], [0], [1], [0, 0, 1, 1], [], []>} : vector<8x128xf32>, vector<128x128xf32>, vector<8x128xf32> -> vector<8x128xf32>
    %c0_8 = arith.constant 0 : index
    %c0_9 = arith.constant 0 : index
    %9 = vector.load %arg5[%c0_8, %c0_9] : memref<1x128xf32, #tpu.memory_space<vmem>>, vector<1x128xf32>
    %10 = vector.broadcast %9 : vector<1x128xf32> to vector<8x128xf32>
    %11 = arith.addf %8, %10 : vector<8x128xf32>
    %c0_10 = arith.constant 0 : index
    %c0_11 = arith.constant 0 : index
    %12 = vector.load %arg6[%c0_10, %c0_11] : memref<8x128xf32, #tpu.memory_space<vmem>>, vector<8x128xf32>
    tpu.vector_store %arg6[%c0_10, %c0_11], %11 {strides = array<i32>} : memref<8x128xf32, #tpu.memory_space<vmem>>, vector<8x128xf32>,
    return
  }
  func.func @transform_0(%arg0: i32) -> (i32, i32) {
    %c0_i32 = arith.constant 0 : i32
    %c0_i32_0 = arith.constant 0 : i32
    return %arg0, %c0_i32 : i32, i32
  }
  func.func @transform_1(%arg0: i32) -> (i32, i32) {
    %c0_i32 = arith.constant 0 : i32
    %c0_i32_0 = arith.constant 0 : i32
    %c0_i32_1 = arith.constant 0 : i32
    return %c0_i32, %c0_i32_0 : i32, i32
  }
  func.func @transform_2(%arg0: i32) -> (i32, i32) {
    %c0_i32 = arith.constant 0 : i32
    %c0_i32_0 = arith.constant 0 : i32
    %c0_i32_1 = arith.constant 0 : i32
    return %c0_i32, %c0_i32_0 : i32, i32
  }
  func.func @transform_3(%arg0: i32) -> (i32, i32) {
    %c0_i32 = arith.constant 0 : i32
    %c0_i32_0 = arith.constant 0 : i32
    %c0_i32_1 = arith.constant 0 : i32
    return %c0_i32, %c0_i32_0 : i32, i32
  }
  func.func @transform_4(%arg0: i32) -> (i32, i32) {
    %c0_i32 = arith.constant 0 : i32
    %c0_i32_0 = arith.constant 0 : i32
    %c0_i32_1 = arith.constant 0 : i32
    return %c0_i32, %c0_i32_0 : i32, i32
  }
  func.func @transform_5(%arg0: i32) -> (i32, i32) {
    %c0_i32 = arith.constant 0 : i32
    %c0_i32_0 = arith.constant 0 : i32
    return %arg0, %c0_i32 : i32, i32
  }
}

</mosaic_0001>

<llo_original>
// kernel: tpu_custom_call.1
$region0: #{tpu_custom_call.1}
  #allocation0 [shape = 'u32[]', space=smem, size = 0x4, offset = 0x4, fixed_abs, tag = 'smem constant byte address 0x4 - core index']
  #allocation1 [shape = 'u32[144,128]{1,0:T(1,128)}', space=vmem, size = 0x12000, scoped, tag = 'internal scratch']
  %s0 = inlined_call_operand.vmem [shape: f32[8,4], index: 0, kind: input, shape index: {}]
  %s1 = inlined_call_operand.vmem [shape: f32[4,128], index: 1, kind: input, shape index: {}]
  %s2 = inlined_call_operand.vmem [shape: f32[1,128], index: 2, kind: input, shape index: {}]
  %s3 = inlined_call_operand.hbm [shape: f32[128,128], index: 3, kind: input, shape index: {}]
  %s4 = inlined_call_operand.vmem [shape: f32[1,128], index: 4, kind: input, shape index: {}]
  %s5 = inlined_call_operand.hbm [shape: f32[8,128], index: 5, kind: output, shape index: {}]
  %s6 = sld [smem:[#allocation0]]
  $region34: #{tpu_custom_call.1} parent=0
    _
  %s8 = ssub.s32 1, %s6
  %s9 = scalar_select 0, %s8, %s6
  $region1: #{tpu_custom_call.1} parent=0
    #allocation2 [shape = 'u8[65536]{0}', space=vmem, size = 0x10000, scoped, tag = 'input window, operand 3, single buffered']
    #allocation3 [shape = 's32[1]{0}', space=sflag, size = 0x4, scoped, tag = 'scoped memory for tpu_custom_call.1']
    #allocation4 [shape = 's32[1]{0}', space=sflag, size = 0x4, scoped, tag = 'scoped memory for tpu_custom_call.1']
    #allocation5 [shape = 'u8[4096]{0}', space=vmem, size = 0x1000, scoped, tag = 'output window, operand 0, single buffered']
    %10 = vsyncpa [#allocation3], 0
    %11 = vsyncpa [#allocation4], 0
    // Predicated region
    $region2: #{tpu_custom_call.1} parent=1 // pred_check
      _
    $region3: #{tpu_custom_call.1} parent=1 // pred_check_branch
      %13 = sbr.rel (0) target = $region5
    $region4: #{tpu_custom_call.1} parent=1 // pred_region
      _
    $region5: #{tpu_custom_call.1} parent=1 // pred_fallthru
      _
    // Predicated region
    $region6: #{tpu_custom_call.1} parent=1 // pred_check
      _
    $region7: #{tpu_custom_call.1} parent=1 // pred_check_branch
      %15 = sbr.rel (0) target = $region9
    $region8: #{tpu_custom_call.1} parent=1 // pred_region
      _
    $region9: #{tpu_custom_call.1} parent=1 // pred_fallthru
      _
    // Predicated region
    $region10: #{tpu_custom_call.1} parent=1 // pred_check
      _
    $region11: #{tpu_custom_call.1} parent=1 // pred_check_branch
      %17 = sbr.rel (0) target = $region13
    $region12: #{tpu_custom_call.1} parent=1 // pred_region
      _
    $region13: #{tpu_custom_call.1} parent=1 // pred_fallthru
      _
    // Predicated region
    $region14: #{tpu_custom_call.1} parent=1 // pred_check
      _
    $region15: #{tpu_custom_call.1} parent=1 // pred_check_branch
      %19 = sbr.rel (0) target = $region17
    $region16: #{tpu_custom_call.1} parent=1 // pred_region
      %s21 = ssub.s32 2048, 2048
      %22 = vsyncadd [#allocation3], %s21
      %s23 = sshll.u32 [#allocation2], 4
      %s24 = int_to_ptr.vmem [resolvable:$true] %s23
      %29 = dma.hbm_to_vmem [thread:$0]  %s3, 2048, %s24, [#allocation3], 128, 128, 8
    $region17: #{tpu_custom_call.1} parent=1 // pred_fallthru
      _
    // Predicated region
    $region18: #{tpu_custom_call.1} parent=1 // pred_check
      _
    $region19: #{tpu_custom_call.1} parent=1 // pred_check_branch
      %31 = sbr.rel (0) target = $region21
    $region20: #{tpu_custom_call.1} parent=1 // pred_region
      _
    $region21: #{tpu_custom_call.1} parent=1 // pred_fallthru
      _
    // Predicated region
    $region22: #{tpu_custom_call.1} parent=1 // pred_check
      _
    $region23: #{tpu_custom_call.1} parent=1 // pred_check_branch
      %33 = sbr.rel (0) target = $region25
    $region24: #{tpu_custom_call.1} parent=1 // pred_region
      %34 = dma.done [#allocation3], 2048
    $region25: #{tpu_custom_call.1} parent=1 // pred_fallthru
      _
    %v35 = vld [vmem:[%s0] sm:$0xff]
    %v36 = vld [vmem:[%s1] sm:$0xf]
    %v37 = vld [vmem:[%s2] sm:$0x1]
    %v38 = vld [vmem:[#allocation2] sm:$0xff]
    %v39 = vld [vmem:[#allocation2 + $0x8] sm:$0xff]
    %v40 = vld [vmem:[#allocation2 + $0x10] sm:$0xff]
    %v41 = vld [vmem:[#allocation2 + $0x18] sm:$0xff]
    %v42 = vld [vmem:[#allocation2 + $0x20] sm:$0xff]
    %v43 = vld [vmem:[#allocation2 + $0x28] sm:$0xff]
    %v44 = vld [vmem:[#allocation2 + $0x30] sm:$0xff]
    %v45 = vld [vmem:[#allocation2 + $0x38] sm:$0xff]
    %v46 = vld [vmem:[#allocation2 + $0x40] sm:$0xff]
    %v47 = vld [vmem:[#allocation2 + $0x48] sm:$0xff]
    %v48 = vld [vmem:[#allocation2 + $0x50] sm:$0xff]
    %v49 = vld [vmem:[#allocation2 + $0x58] sm:$0xff]
    %v50 = vld [vmem:[#allocation2 + $0x60] sm:$0xff]
    %v51 = vld [vmem:[#allocation2 + $0x68] sm:$0xff]
    %v52 = vld [vmem:[#allocation2 + $0x70] sm:$0xff]
    %v53 = vld [vmem:[#allocation2 + $0x78] sm:$0xff]
    %v55 = vlaneseq
    %v56 = vshrl.u32 %v55, 7
    %v57 = vsub.s32 0, %v56
    %v58 = vrot.slane %v37, %v57
    %vm60 = vcmask 31744
    %v62 = vsel %vm60, %v35, 0
    %vm64 = vcmask 1043456
    %v66 = vsel %vm64, %v36, 0
    %68 = vmatprep.subr.mxu0 0.0
    %69 = vmatpush1.msra.mxu0 0.0
    %70 = vmatprep.subr.mxu0 0.0
    %71 = vmatpush1.msra.mxu0 0.0
    %72 = vmatprep.subr.mxu0 0.0
    %73 = vmatpush1.msra.mxu0 0.0
    %74 = vmatprep.subr.mxu0 0.0
    %75 = vmatpush1.msra.mxu0 0.0
    %76 = vmatprep.subr.mxu0 0.0
    %77 = vmatpush1.msra.mxu0 0.0
    %78 = vmatprep.subr.mxu0 0.0
    %79 = vmatpush1.msra.mxu0 0.0
    %80 = vmatprep.subr.mxu0 0.0
    %81 = vmatpush1.msra.mxu0 0.0
    %82 = vmatprep.subr.mxu0 0.0
    %83 = vmatpush1.msra.mxu0 0.0
    %84 = vmatprep.subr.mxu0 0.0
    %85 = vmatpush1.msra.mxu0 0.0
    %86 = vmatprep.subr.mxu0 0.0
    %87 = vmatpush1.msra.mxu0 0.0
    %88 = vmatprep.subr.mxu0 0.0
    %89 = vmatpush1.msra.mxu0 0.0
    %90 = vmatprep.subr.mxu0 0.0
    %91 = vmatpush1.msra.mxu0 0.0
    %92 = vmatprep.subr.mxu0 0.0
    %93 = vmatpush1.msra.mxu0 0.0
    %94 = vmatprep.subr.mxu0 0.0
    %95 = vmatpush1.msra.mxu0 0.0
    %96 = vmatprep.subr.mxu0 0.0
    %97 = vmatpush1.msra.mxu0 0.0
    %98 = vmatprep.subr.mxu0 0.0
    %99 = vmatpush1.msra.mxu0 %v66
    %100 = vmatprep.subr.mxu0 0.0
    %101 = vmatpush2.msra.mxu0 0.0
    %102 = vmatprep.subr.mxu0 0.0
    %103 = vmatpush2.msra.mxu0 0.0
    %104 = vmatprep.subr.mxu0 0.0
    %105 = vmatpush2.msra.mxu0 0.0
    %106 = vmatprep.subr.mxu0 0.0
    %107 = vmatpush2.msra.mxu0 0.0
    %108 = vmatprep.subr.mxu0 0.0
    %109 = vmatpush2.msra.mxu0 0.0
    %110 = vmatprep.subr.mxu0 0.0
    %111 = vmatpush2.msra.mxu0 0.0
    %112 = vmatprep.subr.mxu0 0.0
    %113 = vmatpush2.msra.mxu0 0.0
    %114 = vmatprep.subr.mxu0 0.0
    %115 = vmatpush2.msra.mxu0 0.0
    %116 = vmatprep.subr.mxu0 0.0
    %117 = vmatpush2.msra.mxu0 0.0
    %118 = vmatprep.subr.mxu0 0.0
    %119 = vmatpush2.msra.mxu0 0.0
    %120 = vmatprep.subr.mxu0 0.0
    %121 = vmatpush2.msra.mxu0 0.0
    %122 = vmatprep.subr.mxu0 0.0
    %123 = vmatpush2.msra.mxu0 0.0
    %124 = vmatprep.subr.mxu0 0.0
    %125 = vmatpush2.msra.mxu0 0.0
    %126 = vmatprep.subr.mxu0 0.0
    %127 = vmatpush2.msra.mxu0 0.0
    %128 = vmatprep.subr.mxu0 0.0
    %129 = vmatpush2.msra.mxu0 0.0
    %130 = vmatprep.subr.mxu0 0.0
    %131 = vmatpush2.msra.mxu0 0.0
    %132 = vmatprep.mubr.f32.mxu0 0.0
    %133 = vmatmul.mubr.f32.gmra.mxu0 %v62
    %v134 = vpop.f32.mrf.mxu0
    %v135 = vadd.f32 %v58, %v134
    %v136 = vpop.f32.mrf.mxu0
    %137 = vdwg.mxu0
    %v138 = vtanh.pop %v135
    %v139 = vld [vmem:[%s4] sm:$0x1]
    %v141 = vlaneseq
    %v142 = vshrl.u32 %v141, 7
    %v143 = vsub.s32 0, %v142
    %v144 = vrot.slane %v139, %v143
    %146 = vmatprep.subr.mxu0 0.0
    %147 = vmatpush1.msra.mxu0 %v53
    %148 = vmatprep.subr.mxu0 0.0
    %149 = vmatpush1.msra.mxu0 %v52
    %150 = vmatprep.subr.mxu0 0.0
    %151 = vmatpush1.msra.mxu0 %v51
    %152 = vmatprep.subr.mxu0 0.0
    %153 = vmatpush1.msra.mxu0 %v50
    %154 = vmatprep.subr.mxu0 0.0
    %155 = vmatpush1.msra.mxu0 %v49
    %156 = vmatprep.subr.mxu0 0.0
    %157 = vmatpush1.msra.mxu0 %v48
    %158 = vmatprep.subr.mxu0 0.0
    %159 = vmatpush1.msra.mxu0 %v47
    %160 = vmatprep.subr.mxu0 0.0
    %161 = vmatpush1.msra.mxu0 %v46
    %162 = vmatprep.subr.mxu0 0.0
    %163 = vmatpush1.msra.mxu0 %v45
    %164 = vmatprep.subr.mxu0 0.0
    %165 = vmatpush1.msra.mxu0 %v44
    %166 = vmatprep.subr.mxu0 0.0
    %167 = vmatpush1.msra.mxu0 %v43
    %168 = vmatprep.subr.mxu0 0.0
    %169 = vmatpush1.msra.mxu0 %v42
    %170 = vmatprep.subr.mxu0 0.0
    %171 = vmatpush1.msra.mxu0 %v41
    %172 = vmatprep.subr.mxu0 0.0
    %173 = vmatpush1.msra.mxu0 %v40
    %174 = vmatprep.subr.mxu0 0.0
    %175 = vmatpush1.msra.mxu0 %v39
    %176 = vmatprep.subr.mxu0 0.0
    %177 = vmatpush1.msra.mxu0 %v38
    %178 = vmatprep.subr.mxu0 0.0
    %179 = vmatpush2.msra.mxu0 0.0
    %180 = vmatprep.subr.mxu0 0.0
    %181 = vmatpush2.msra.mxu0 0.0
    %182 = vmatprep.subr.mxu0 0.0
    %183 = vmatpush2.msra.mxu0 0.0
    %184 = vmatprep.subr.mxu0 0.0
    %185 = vmatpush2.msra.mxu0 0.0
    %186 = vmatprep.subr.mxu0 0.0
    %187 = vmatpush2.msra.mxu0 0.0
    %188 = vmatprep.subr.mxu0 0.0
    %189 = vmatpush2.msra.mxu0 0.0
    %190 = vmatprep.subr.mxu0 0.0
    %191 = vmatpush2.msra.mxu0 0.0
    %192 = vmatprep.subr.mxu0 0.0
    %193 = vmatpush2.msra.mxu0 0.0
    %194 = vmatprep.subr.mxu0 0.0
    %195 = vmatpush2.msra.mxu0 0.0
    %196 = vmatprep.subr.mxu0 0.0
    %197 = vmatpush2.msra.mxu0 0.0
    %198 = vmatprep.subr.mxu0 0.0
    %199 = vmatpush2.msra.mxu0 0.0
    %200 = vmatprep.subr.mxu0 0.0
    %201 = vmatpush2.msra.mxu0 0.0
    %202 = vmatprep.subr.mxu0 0.0
    %203 = vmatpush2.msra.mxu0 0.0
    %204 = vmatprep.subr.mxu0 0.0
    %205 = vmatpush2.msra.mxu0 0.0
    %206 = vmatprep.subr.mxu0 0.0
    %207 = vmatpush2.msra.mxu0 0.0
    %208 = vmatprep.subr.mxu0 0.0
    %209 = vmatpush2.msra.mxu0 0.0
    %210 = vmatprep.mubr.f32.mxu0 0.0
    %211 = vmatmul.mubr.f32.gmra.mxu0 %v138
    %v212 = vpop.f32.mrf.mxu0
    %v213 = vadd.f32 %v144, %v212
    %v214 = vpop.f32.mrf.mxu0
    %215 = vdwg.mxu0
    %216 = vst [vmem:[#allocation5] sm:$0xff] %v213
    // Predicated region
    $region26: #{tpu_custom_call.1} parent=1 // pred_check
      _
    $region27: #{tpu_custom_call.1} parent=1 // pred_check_branch
      %218 = sbr.rel (0) target = $region29
    $region28: #{tpu_custom_call.1} parent=1 // pred_region
      %s220 = ssub.s32 128, 128
      %221 = vsyncadd [#allocation4], %s220
      %s223 = sshll.u32 [#allocation5], 4
      %s224 = int_to_ptr.vmem [resolvable:$true] %s223
      %226 = dma.vmem_to_hbm [thread:$0]  %s224, 128, %s5, [#allocation4]
    $region29: #{tpu_custom_call.1} parent=1 // pred_fallthru
      _
    // Predicated region
    $region30: #{tpu_custom_call.1} parent=1 // pred_check
      _
    $region31: #{tpu_custom_call.1} parent=1 // pred_check_branch
      %228 = sbr.rel (0) target = $region33
    $region32: #{tpu_custom_call.1} parent=1 // pred_region
      %229 = dma.done [#allocation4], 128
    $region33: #{tpu_custom_call.1} parent=1 // pred_fallthru
      _
    %230 = vsyncpa [#allocation3], 1
    %231 = vsyncpa [#allocation4], 1

// kernel: tpu_custom_call.1
$region0: #{tpu_custom_call.1}
  #allocation0 [shape = 'u32[]', space=smem, size = 0x4, offset = 0x4, fixed_abs, tag = 'smem constant byte address 0x4 - core index']
  #allocation1 [shape = 'u32[144,128]{1,0:T(1,128)}', space=vmem, size = 0x12000, scoped, tag = 'internal scratch']
  %s0 = inlined_call_operand.vmem [shape: f32[8,4], index: 0, kind: input, shape index: {}]
  %s1 = inlined_call_operand.vmem [shape: f32[4,128], index: 1, kind: input, shape index: {}]
  %s2 = inlined_call_operand.vmem [shape: f32[1,128], index: 2, kind: input, shape index: {}]
  %s3 = inlined_call_operand.hbm [shape: f32[128,128], index: 3, kind: input, shape index: {}]
  %s4 = inlined_call_operand.vmem [shape: f32[1,128], index: 4, kind: input, shape index: {}]
  %s5 = inlined_call_operand.hbm [shape: f32[8,128], index: 5, kind: output, shape index: {}]
  %s6 = sld [smem:[#allocation0]]
  $region34: #{tpu_custom_call.1} parent=0
    _
  %s8 = ssub.s32 1, %s6
  %s9 = scalar_select 0, %s8, %s6
  $region1: #{tpu_custom_call.1} parent=0
    #allocation2 [shape = 'u8[65536]{0}', space=vmem, size = 0x10000, scoped, tag = 'input window, operand 3, single buffered']
    #allocation3 [shape = 's32[1]{0}', space=sflag, size = 0x4, scoped, tag = 'scoped memory for tpu_custom_call.1']
    #allocation4 [shape = 's32[1]{0}', space=sflag, size = 0x4, scoped, tag = 'scoped memory for tpu_custom_call.1']
    #allocation5 [shape = 'u8[4096]{0}', space=vmem, size = 0x1000, scoped, tag = 'output window, operand 0, single buffered']
    %10 = vsyncpa [#allocation3], 0
    %11 = vsyncpa [#allocation4], 0
    // Predicated region
    $region2: #{tpu_custom_call.1} parent=1 // pred_check
      _
    $region3: #{tpu_custom_call.1} parent=1 // pred_check_branch
      %13 = sbr.rel (0) target = $region5
    $region4: #{tpu_custom_call.1} parent=1 // pred_region
      _
    $region5: #{tpu_custom_call.1} parent=1 // pred_fallthru
      _
    // Predicated region
    $region6: #{tpu_custom_call.1} parent=1 // pred_check
      _
    $region7: #{tpu_custom_call.1} parent=1 // pred_check_branch
      %15 = sbr.rel (0) target = $region9
    $region8: #{tpu_custom_call.1} parent=1 // pred_region
      _
    $region9: #{tpu_custom_call.1} parent=1 // pred_fallthru
      _
    // Predicated region
    $region10: #{tpu_custom_call.1} parent=1 // pred_check
      _
    $region11: #{tpu_custom_call.1} parent=1 // pred_check_branch
      %17 = sbr.rel (0) target = $region13
    $region12: #{tpu_custom_call.1} parent=1 // pred_region
      _
    $region13: #{tpu_custom_call.1} parent=1 // pred_fallthru
      _
    // Predicated region
    $region14: #{tpu_custom_call.1} parent=1 // pred_check
      _
    $region15: #{tpu_custom_call.1} parent=1 // pred_check_branch
      %19 = sbr.rel (0) target = $region17
    $region16: #{tpu_custom_call.1} parent=1 // pred_region
      %s21 = ssub.s32 2048, 2048
      %22 = vsyncadd [#allocation3], %s21
      %s23 = sshll.u32 [#allocation2], 4
      %s24 = int_to_ptr.vmem [resolvable:$true] %s23
      %29 = dma.hbm_to_vmem [thread:$0]  %s3, 2048, %s24, [#allocation3], 128, 128, 8
    $region17: #{tpu_custom_call.1} parent=1 // pred_fallthru
      _
    // Predicated region
    $region18: #{tpu_custom_call.1} parent=1 // pred_check
      _
    $region19: #{tpu_custom_call.1} parent=1 // pred_check_branch
      %31 = sbr.rel (0) target = $region21
    $region20: #{tpu_custom_call.1} parent=1 // pred_region
      _
    $region21: #{tpu_custom_call.1} parent=1 // pred_fallthru
      _
    // Predicated region
    $region22: #{tpu_custom_call.1} parent=1 // pred_check
      _
    $region23: #{tpu_custom_call.1} parent=1 // pred_check_branch
      %33 = sbr.rel (0) target = $region25
    $region24: #{tpu_custom_call.1} parent=1 // pred_region
      %34 = dma.done [#allocation3], 2048
    $region25: #{tpu_custom_call.1} parent=1 // pred_fallthru
      _
    %v35 = vld [vmem:[%s0] sm:$0xff]
    %v36 = vld [vmem:[%s1] sm:$0xf]
    %v37 = vld [vmem:[%s2] sm:$0x1]
    %v38 = vld [vmem:[#allocation2] sm:$0xff]
    %v39 = vld [vmem:[#allocation2 + $0x8] sm:$0xff]
    %v40 = vld [vmem:[#allocation2 + $0x10] sm:$0xff]
    %v41 = vld [vmem:[#allocation2 + $0x18] sm:$0xff]
    %v42 = vld [vmem:[#allocation2 + $0x20] sm:$0xff]
    %v43 = vld [vmem:[#allocation2 + $0x28] sm:$0xff]
    %v44 = vld [vmem:[#allocation2 + $0x30] sm:$0xff]
    %v45 = vld [vmem:[#allocation2 + $0x38] sm:$0xff]
    %v46 = vld [vmem:[#allocation2 + $0x40] sm:$0xff]
    %v47 = vld [vmem:[#allocation2 + $0x48] sm:$0xff]
    %v48 = vld [vmem:[#allocation2 + $0x50] sm:$0xff]
    %v49 = vld [vmem:[#allocation2 + $0x58] sm:$0xff]
    %v50 = vld [vmem:[#allocation2 + $0x60] sm:$0xff]
    %v51 = vld [vmem:[#allocation2 + $0x68] sm:$0xff]
    %v52 = vld [vmem:[#allocation2 + $0x70] sm:$0xff]
    %v53 = vld [vmem:[#allocation2 + $0x78] sm:$0xff]
    %v55 = vlaneseq
    %v56 = vshrl.u32 %v55, 7
    %v57 = vsub.s32 0, %v56
    %v58 = vrot.slane %v37, %v57
    %vm60 = vcmask 31744
    %v62 = vsel %vm60, %v35, 0
    %vm64 = vcmask 1043456
    %v66 = vsel %vm64, %v36, 0
    %68 = vmatprep.subr.mxu0 0.0
    %69 = vmatpush1.msra.mxu0 0.0
    %70 = vmatprep.subr.mxu0 0.0
    %71 = vmatpush1.msra.mxu0 0.0
    %72 = vmatprep.subr.mxu0 0.0
    %73 = vmatpush1.msra.mxu0 0.0
    %74 = vmatprep.subr.mxu0 0.0
    %75 = vmatpush1.msra.mxu0 0.0
    %76 = vmatprep.subr.mxu0 0.0
    %77 = vmatpush1.msra.mxu0 0.0
    %78 = vmatprep.subr.mxu0 0.0
    %79 = vmatpush1.msra.mxu0 0.0
    %80 = vmatprep.subr.mxu0 0.0
    %81 = vmatpush1.msra.mxu0 0.0
    %82 = vmatprep.subr.mxu0 0.0
    %83 = vmatpush1.msra.mxu0 0.0
    %84 = vmatprep.subr.mxu0 0.0
    %85 = vmatpush1.msra.mxu0 0.0
    %86 = vmatprep.subr.mxu0 0.0
    %87 = vmatpush1.msra.mxu0 0.0
    %88 = vmatprep.subr.mxu0 0.0
    %89 = vmatpush1.msra.mxu0 0.0
    %90 = vmatprep.subr.mxu0 0.0
    %91 = vmatpush1.msra.mxu0 0.0
    %92 = vmatprep.subr.mxu0 0.0
    %93 = vmatpush1.msra.mxu0 0.0
    %94 = vmatprep.subr.mxu0 0.0
    %95 = vmatpush1.msra.mxu0 0.0
    %96 = vmatprep.subr.mxu0 0.0
    %97 = vmatpush1.msra.mxu0 0.0
    %98 = vmatprep.subr.mxu0 0.0
    %99 = vmatpush1.msra.mxu0 %v66
    %100 = vmatprep.subr.mxu0 0.0
    %101 = vmatpush2.msra.mxu0 0.0
    %102 = vmatprep.subr.mxu0 0.0
    %103 = vmatpush2.msra.mxu0 0.0
    %104 = vmatprep.subr.mxu0 0.0
    %105 = vmatpush2.msra.mxu0 0.0
    %106 = vmatprep.subr.mxu0 0.0
    %107 = vmatpush2.msra.mxu0 0.0
    %108 = vmatprep.subr.mxu0 0.0
    %109 = vmatpush2.msra.mxu0 0.0
    %110 = vmatprep.subr.mxu0 0.0
    %111 = vmatpush2.msra.mxu0 0.0
    %112 = vmatprep.subr.mxu0 0.0
    %113 = vmatpush2.msra.mxu0 0.0
    %114 = vmatprep.subr.mxu0 0.0
    %115 = vmatpush2.msra.mxu0 0.0
    %116 = vmatprep.subr.mxu0 0.0
    %117 = vmatpush2.msra.mxu0 0.0
    %118 = vmatprep.subr.mxu0 0.0
    %119 = vmatpush2.msra.mxu0 0.0
    %120 = vmatprep.subr.mxu0 0.0
    %121 = vmatpush2.msra.mxu0 0.0
    %122 = vmatprep.subr.mxu0 0.0
    %123 = vmatpush2.msra.mxu0 0.0
    %124 = vmatprep.subr.mxu0 0.0
    %125 = vmatpush2.msra.mxu0 0.0
    %126 = vmatprep.subr.mxu0 0.0
    %127 = vmatpush2.msra.mxu0 0.0
    %128 = vmatprep.subr.mxu0 0.0
    %129 = vmatpush2.msra.mxu0 0.0
    %130 = vmatprep.subr.mxu0 0.0
    %131 = vmatpush2.msra.mxu0 0.0
    %132 = vmatprep.mubr.f32.mxu0 0.0
    %133 = vmatmul.mubr.f32.gmra.mxu0 %v62
    %v134 = vpop.f32.mrf.mxu0
    %v135 = vadd.f32 %v58, %v134
    %v136 = vpop.f32.mrf.mxu0
    %137 = vdwg.mxu0
    %v138 = vtanh.pop %v135
    %v139 = vld [vmem:[%s4] sm:$0x1]
    %v141 = vlaneseq
    %v142 = vshrl.u32 %v141, 7
    %v143 = vsub.s32 0, %v142
    %v144 = vrot.slane %v139, %v143
    %146 = vmatprep.subr.mxu0 0.0
    %147 = vmatpush1.msra.mxu0 %v53
    %148 = vmatprep.subr.mxu0 0.0
    %149 = vmatpush1.msra.mxu0 %v52
    %150 = vmatprep.subr.mxu0 0.0
    %151 = vmatpush1.msra.mxu0 %v51
    %152 = vmatprep.subr.mxu0 0.0
    %153 = vmatpush1.msra.mxu0 %v50
    %154 = vmatprep.subr.mxu0 0.0
    %155 = vmatpush1.msra.mxu0 %v49
    %156 = vmatprep.subr.mxu0 0.0
    %157 = vmatpush1.msra.mxu0 %v48
    %158 = vmatprep.subr.mxu0 0.0
    %159 = vmatpush1.msra.mxu0 %v47
    %160 = vmatprep.subr.mxu0 0.0
    %161 = vmatpush1.msra.mxu0 %v46
    %162 = vmatprep.subr.mxu0 0.0
    %163 = vmatpush1.msra.mxu0 %v45
    %164 = vmatprep.subr.mxu0 0.0
    %165 = vmatpush1.msra.mxu0 %v44
    %166 = vmatprep.subr.mxu0 0.0
    %167 = vmatpush1.msra.mxu0 %v43
    %168 = vmatprep.subr.mxu0 0.0
    %169 = vmatpush1.msra.mxu0 %v42
    %170 = vmatprep.subr.mxu0 0.0
    %171 = vmatpush1.msra.mxu0 %v41
    %172 = vmatprep.subr.mxu0 0.0
    %173 = vmatpush1.msra.mxu0 %v40
    %174 = vmatprep.subr.mxu0 0.0
    %175 = vmatpush1.msra.mxu0 %v39
    %176 = vmatprep.subr.mxu0 0.0
    %177 = vmatpush1.msra.mxu0 %v38
    %178 = vmatprep.subr.mxu0 0.0
    %179 = vmatpush2.msra.mxu0 0.0
    %180 = vmatprep.subr.mxu0 0.0
    %181 = vmatpush2.msra.mxu0 0.0
    %182 = vmatprep.subr.mxu0 0.0
    %183 = vmatpush2.msra.mxu0 0.0
    %184 = vmatprep.subr.mxu0 0.0
    %185 = vmatpush2.msra.mxu0 0.0
    %186 = vmatprep.subr.mxu0 0.0
    %187 = vmatpush2.msra.mxu0 0.0
    %188 = vmatprep.subr.mxu0 0.0
    %189 = vmatpush2.msra.mxu0 0.0
    %190 = vmatprep.subr.mxu0 0.0
    %191 = vmatpush2.msra.mxu0 0.0
    %192 = vmatprep.subr.mxu0 0.0
    %193 = vmatpush2.msra.mxu0 0.0
    %194 = vmatprep.subr.mxu0 0.0
    %195 = vmatpush2.msra.mxu0 0.0
    %196 = vmatprep.subr.mxu0 0.0
    %197 = vmatpush2.msra.mxu0 0.0
    %198 = vmatprep.subr.mxu0 0.0
    %199 = vmatpush2.msra.mxu0 0.0
    %200 = vmatprep.subr.mxu0 0.0
    %201 = vmatpush2.msra.mxu0 0.0
    %202 = vmatprep.subr.mxu0 0.0
    %203 = vmatpush2.msra.mxu0 0.0
    %204 = vmatprep.subr.mxu0 0.0
    %205 = vmatpush2.msra.mxu0 0.0
    %206 = vmatprep.subr.mxu0 0.0
    %207 = vmatpush2.msra.mxu0 0.0
    %208 = vmatprep.subr.mxu0 0.0
    %209 = vmatpush2.msra.mxu0 0.0
    %210 = vmatprep.mubr.f32.mxu0 0.0
    %211 = vmatmul.mubr.f32.gmra.mxu0 %v138
    %v212 = vpop.f32.mrf.mxu0
    %v213 = vadd.f32 %v144, %v212
    %v214 = vpop.f32.mrf.mxu0
    %215 = vdwg.mxu0
    %216 = vst [vmem:[#allocation5] sm:$0xff] %v213
    // Predicated region
    $region26: #{tpu_custom_call.1} parent=1 // pred_check
      _
    $region27: #{tpu_custom_call.1} parent=1 // pred_check_branch
      %218 = sbr.rel (0) target = $region29
    $region28: #{tpu_custom_call.1} parent=1 // pred_region
      %s220 = ssub.s32 128, 128
      %221 = vsyncadd [#allocation4], %s220
      %s223 = sshll.u32 [#allocation5], 4
      %s224 = int_to_ptr.vmem [resolvable:$true] %s223
      %226 = dma.vmem_to_hbm [thread:$0]  %s224, 128, %s5, [#allocation4]
    $region29: #{tpu_custom_call.1} parent=1 // pred_fallthru
      _
    // Predicated region
    $region30: #{tpu_custom_call.1} parent=1 // pred_check
      _
    $region31: #{tpu_custom_call.1} parent=1 // pred_check_branch
      %228 = sbr.rel (0) target = $region33
    $region32: #{tpu_custom_call.1} parent=1 // pred_region
      %229 = dma.done [#allocation4], 128
    $region33: #{tpu_custom_call.1} parent=1 // pred_fallthru
      _
    %230 = vsyncpa [#allocation3], 1
    %231 = vsyncpa [#allocation4], 1

</llo_original>
